<compile_context>
chip_gen: v7x
topology: tpu7x:2x2x1
jax: 0.10.0
libtpu: 0.0.40
codegen_flags: <defaults>
</compile_context>

<pallas_src>
import math

import jax
import jax.numpy as jnp
from jax.experimental import pallas as pl
from jax.experimental.pallas import tpu as pltpu


# --------------------------------------------------------------------------- #
# Fused kernel: per grid step it
#   * normalizes one lane-dense row tile of x:  y = (x - mean) * (1/std)
#   * whitens one row tile of Sigma:            S' = (1/std)[rows] * S * (1/std)[cols]
# Steps beyond either tile count clamp to the last tile and recompute it
# (idempotent rewrite), so one 1-D "parallel" grid covers both outputs safely
# even when the axis is split across TensorCores.
# --------------------------------------------------------------------------- #
def _fused_kernel(x_ref, mean_ref, std_ref, sig_rstd_ref, sig_cstd_ref, sigma_ref,
                  y_ref, sigma_out_ref):
    # Reciprocal hoisted to the (1, W) vector: one small reciprocal per tile
    # instead of a divide on every (tile_rows, W) element.
    inv = 1.0 / std_ref[...]                                         # (1, W)
    y_ref[...] = ((x_ref[...] - mean_ref[...]) * inv).astype(y_ref.dtype)

    inv_r = 1.0 / sig_rstd_ref[...]                                  # (tile_sr, 1)
    inv_c = 1.0 / sig_cstd_ref[...]                                  # (1, D)
    sigma_out_ref[...] = (sigma_ref[...] * inv_r * inv_c).astype(sigma_out_ref.dtype)


# Conservative tile budget: fits v7x's 32 MiB scoped / 64 MiB physical VMEM.
_X_TILE_BUDGET_BYTES = 12 * 1024 * 1024
_SIGMA_TILE_BUDGET_BYTES = 4 * 1024 * 1024


def _lane_dense_factor(n_rows, d):
    """How many x rows to fold together so the row width is a multiple of 128."""
    if d % 128 == 0:
        return 1
    k = 128 // math.gcd(d, 128)
    return k if (n_rows % k == 0) else 1


def _pick_row_tile(total_rows, row_width, itemsize, budget, want_two_steps):
    """Largest row tile with 2(double-buffer) x 2(in+out) copies under budget."""
    max_rows = max(1, budget // (4 * row_width * itemsize))
    tile = min(total_rows, max_rows)
    if want_two_steps and total_rows >= 16:
        tile = min(tile, -(-total_rows // 2))      # ceil(total_rows / 2): >=2 grid steps
    if tile < total_rows:
        tile = max(8, (tile // 8) * 8)             # sublane (8) alignment
        tile = min(tile, total_rows)
    return tile


def normalize_distribution_forward(x, mean, std, sigma):
    """Pallas implementation of Normalize_DistributionLayer.forward."""
    N, D = x.shape
    assert sigma.shape == (D, D)
    dtype = x.dtype
    itemsize = jnp.dtype(dtype).itemsize

    # ---- lane-dense relayout of x:  (N, D) -> (R, W), W % 128 == 0 when possible
    k = _lane_dense_factor(N, D)
    R, W = N // k, k * D
    x2 = x.reshape(R, W)                                  # free (row-major fold)
    mean_w = jnp.tile(mean.reshape(1, D), (1, k))         # (1, W)
    std_w = jnp.tile(std.reshape(1, D), (1, k))           # (1, W)
    std_row = std.reshape(D, 1)                           # (D, 1)  Sigma row scale
    std_col = std.reshape(1, D)                           # (1, D)  Sigma col scale

    # ---- tile sizes (VMEM-budgeted, >=2 grid steps when there are enough rows)
    tile_rx = _pick_row_tile(R, W, itemsize, _X_TILE_BUDGET_BYTES, True)
    tile_rs = _pick_row_tile(D, D, jnp.dtype(sigma.dtype).itemsize,
                             _SIGMA_TILE_BUDGET_BYTES, False)

    nx = pl.cdiv(R, tile_rx)
    ns = pl.cdiv(D, tile_rs)
    num_steps = max(nx, ns)

    def x_map(i):
        return (jnp.minimum(i, nx - 1), 0)

    def s_map(i):
        return (jnp.minimum(i, ns - 1), 0)

    y2, sigma_out = pl.pallas_call(
        _fused_kernel,
        out_shape=(jax.ShapeDtypeStruct((R, W), dtype),
                   jax.ShapeDtypeStruct((D, D), sigma.dtype)),
        grid=(num_steps,),
        in_specs=[
            pl.BlockSpec((tile_rx, W), x_map),            # x (lane-dense rows)
            pl.BlockSpec((1, W), lambda i: (0, 0)),       # mean (tiled to W lanes)
            pl.BlockSpec((1, W), lambda i: (0, 0)),       # std  (tiled to W lanes)
            pl.BlockSpec((tile_rs, 1), s_map),            # std as column (Sigma rows)
            pl.BlockSpec((1, D), lambda i: (0, 0)),       # std as row (Sigma cols)
            pl.BlockSpec((tile_rs, D), s_map),            # Sigma row tile
        ],
        out_specs=(
            pl.BlockSpec((tile_rx, W), x_map),
            pl.BlockSpec((tile_rs, D), s_map),
        ),
        compiler_params=pltpu.CompilerParams(
            dimension_semantics=("parallel",),
            vmem_limit_bytes=32 * 1024 * 1024,
        ),
    )(x2, mean_w, std_w, std_row, std_col, sigma)

    return y2.reshape(N, D), sigma_out


if __name__ == "__main__":
    key = jax.random.PRNGKey(0)
    k0, k1, k2 = jax.random.split(key, 3)

    N, D = 320, 16   # small, but enough rows for multiple lane-dense row tiles

    # "X0" data used by __init__ to derive the (non-trainable) mean/std params.
    X0 = jax.random.normal(k0, (64, D), dtype=jnp.float32) * 2.0 + 0.5
    mean = jnp.mean(X0, axis=0)
    std = jnp.std(X0, axis=0, ddof=1)   # torch.std default is unbiased (ddof=1)

    # forward inputs
    x = jax.random.normal(k1, (N, D), dtype=jnp.float32)
    A = jax.random.normal(k2, (D, D), dtype=jnp.float32)
    sigma = A @ A.T + jnp.eye(D, dtype=jnp.float32)   # SPD covariance

    y, sigma_out = normalize_distribution_forward(x, mean, std, sigma)
    jax.block_until_ready((y, sigma_out))

    # Pure-JAX reference.
    y_ref = (x - mean) / std
    inv = 1.0 / std
    sigma_ref = (inv[:, None] * sigma) * inv[None, :]
    assert jnp.allclose(y, y_ref, atol=1e-5, rtol=1e-5), "mean_result mismatch"
    assert jnp.allclose(sigma_out, sigma_ref, atol=1e-4, rtol=1e-5), "Sigma_result mismatch"

    # Also exercise the non-lane-dense fallback path (N not divisible by 128/D).
    xb = jax.random.normal(k1, (10, D), dtype=jnp.float32)
    yb, sb = normalize_distribution_forward(xb, mean, std, sigma)
    jax.block_until_ready((yb, sb))
    assert jnp.allclose(yb, (xb - mean) / std, atol=1e-5, rtol=1e-5), "fallback mismatch"
    assert jnp.allclose(sb, sigma_ref, atol=1e-4, rtol=1e-5), "fallback Sigma mismatch"

    print("KERNEL_OK")
</pallas_src>

<mosaic_0001>
module attributes {stable_mosaic.version = 11 : i64} {
  func.func @_fused_kernel(%arg0: i32, %arg1: memref<16x128xf32, #tpu.memory_space<vmem>>, %arg2: memref<1x128xf32, #tpu.memory_space<vmem>>, %arg3: memref<1x128xf32, #tpu.memory_space<vmem>>, %arg4: memref<16x1xf32, #tpu.memory_space<vmem>>, %arg5: memref<1x16xf32, #tpu.memory_space<vmem>>, %arg6: memref<16x16xf32, #tpu.memory_space<vmem>>, %arg7: memref<16x128xf32, #tpu.memory_space<vmem>>, %arg8: memref<16x16xf32, #tpu.memory_space<vmem>>) attributes {dimension_semantics = [#tpu.dimension_semantics<parallel>], iteration_bounds = array<i64: 3>, scalar_prefetch = 0 : i64, scratch_operands = 0 : i64, tpu.core_type = #tpu.core_type<tc>, window_params = [{transform_indices = @transform_0, window_bounds = array<i64: 16, 128>}, {pipeline_mode = #tpu.pipeline_mode<synchronous>, transform_indices = @transform_1, window_bounds = array<i64: 1, 128>}, {pipeline_mode = #tpu.pipeline_mode<synchronous>, transform_indices = @transform_2, window_bounds = array<i64: 1, 128>}, {transform_indices = @transform_3, window_bounds = array<i64: 16, 1>}, {pipeline_mode = #tpu.pipeline_mode<synchronous>, transform_indices = @transform_4, window_bounds = array<i64: 1, 16>}, {transform_indices = @transform_5, window_bounds = array<i64: 16, 16>}, {transform_indices = @transform_6, window_bounds = array<i64: 16, 128>}, {transform_indices = @transform_7, window_bounds = array<i64: 16, 16>}]} {
    %c0 = arith.constant 0 : index
    %c0_0 = arith.constant 0 : index
    %0 = vector.load %arg3[%c0, %c0_0] : memref<1x128xf32, #tpu.memory_space<vmem>>, vector<1x128xf32>
    %cst = arith.constant 1.000000e+00 : f32
    %1 = vector.broadcast %cst : f32 to vector<1x128xf32>
    %2 = arith.divf %1, %0 : vector<1x128xf32>
    %c0_1 = arith.constant 0 : index
    %c0_2 = arith.constant 0 : index
    %3 = vector.load %arg1[%c0_1, %c0_2] : memref<16x128xf32, #tpu.memory_space<vmem>>, vector<16x128xf32>
    %c0_3 = arith.constant 0 : index
    %c0_4 = arith.constant 0 : index
    %4 = vector.load %arg2[%c0_3, %c0_4] : memref<1x128xf32, #tpu.memory_space<vmem>>, vector<1x128xf32>
    %5 = vector.broadcast %4 : vector<1x128xf32> to vector<16x128xf32>
    %6 = arith.subf %3, %5 : vector<16x128xf32>
    %7 = vector.broadcast %2 : vector<1x128xf32> to vector<16x128xf32>
    %8 = arith.mulf %6, %7 : vector<16x128xf32>
    %c0_5 = arith.constant 0 : index
    %c0_6 = arith.constant 0 : index
    %9 = vector.load %arg7[%c0_5, %c0_6] : memref<16x128xf32, #tpu.memory_space<vmem>>, vector<16x128xf32>
    tpu.vector_store %arg7[%c0_5, %c0_6], %8 {strides = array<i32>} : memref<16x128xf32, #tpu.memory_space<vmem>>, vector<16x128xf32>,
    %c0_7 = arith.constant 0 : index
    %c0_8 = arith.constant 0 : index
    %10 = vector.load %arg4[%c0_7, %c0_8] : memref<16x1xf32, #tpu.memory_space<vmem>>, vector<16x1xf32>
    %cst_9 = arith.constant 1.000000e+00 : f32
    %11 = vector.broadcast %cst_9 : f32 to vector<16x1xf32>
    %12 = arith.divf %11, %10 : vector<16x1xf32>
    %c0_10 = arith.constant 0 : index
    %c0_11 = arith.constant 0 : index
    %13 = vector.load %arg5[%c0_10, %c0_11] : memref<1x16xf32, #tpu.memory_space<vmem>>, vector<1x16xf32>
    %cst_12 = arith.constant 1.000000e+00 : f32
    %14 = vector.broadcast %cst_12 : f32 to vector<1x16xf32>
    %15 = arith.divf %14, %13 : vector<1x16xf32>
    %c0_13 = arith.constant 0 : index
    %c0_14 = arith.constant 0 : index
    %16 = vector.load %arg6[%c0_13, %c0_14] : memref<16x16xf32, #tpu.memory_space<vmem>>, vector<16x16xf32>
    %17 = vector.broadcast %12 : vector<16x1xf32> to vector<16x16xf32>
    %18 = arith.mulf %16, %17 : vector<16x16xf32>
    %19 = vector.broadcast %15 : vector<1x16xf32> to vector<16x16xf32>
    %20 = arith.mulf %18, %19 : vector<16x16xf32>
    %c0_15 = arith.constant 0 : index
    %c0_16 = arith.constant 0 : index
    %21 = vector.load %arg8[%c0_15, %c0_16] : memref<16x16xf32, #tpu.memory_space<vmem>>, vector<16x16xf32>
    tpu.vector_store %arg8[%c0_15, %c0_16], %20 {strides = array<i32>} : memref<16x16xf32, #tpu.memory_space<vmem>>, vector<16x16xf32>,
    return
  }
  func.func @transform_0(%arg0: i32) -> (i32, i32) {
    %c2_i32 = arith.constant 2 : i32
    %0 = arith.minsi %arg0, %c2_i32 : i32
    %c0_i32 = arith.constant 0 : i32
    %c0_i32_0 = arith.constant 0 : i32
    return %0, %c0_i32 : i32, i32
  }
  func.func @transform_1(%arg0: i32) -> (i32, i32) {
    %c0_i32 = arith.constant 0 : i32
    %c0_i32_0 = arith.constant 0 : i32
    %c0_i32_1 = arith.constant 0 : i32
    return %c0_i32, %c0_i32_0 : i32, i32
  }
  func.func @transform_2(%arg0: i32) -> (i32, i32) {
    %c0_i32 = arith.constant 0 : i32
    %c0_i32_0 = arith.constant 0 : i32
    %c0_i32_1 = arith.constant 0 : i32
    return %c0_i32, %c0_i32_0 : i32, i32
  }
  func.func @transform_3(%arg0: i32) -> (i32, i32) {
    %c0_i32 = arith.constant 0 : i32
    %0 = arith.minsi %arg0, %c0_i32 : i32
    %c0_i32_0 = arith.constant 0 : i32
    %c0_i32_1 = arith.constant 0 : i32
    return %0, %c0_i32_0 : i32, i32
  }
  func.func @transform_4(%arg0: i32) -> (i32, i32) {
    %c0_i32 = arith.constant 0 : i32
    %c0_i32_0 = arith.constant 0 : i32
    %c0_i32_1 = arith.constant 0 : i32
    return %c0_i32, %c0_i32_0 : i32, i32
  }
  func.func @transform_5(%arg0: i32) -> (i32, i32) {
    %c0_i32 = arith.constant 0 : i32
    %0 = arith.minsi %arg0, %c0_i32 : i32
    %c0_i32_0 = arith.constant 0 : i32
    %c0_i32_1 = arith.constant 0 : i32
    return %0, %c0_i32_0 : i32, i32
  }
  func.func @transform_6(%arg0: i32) -> (i32, i32) {
    %c2_i32 = arith.constant 2 : i32
    %0 = arith.minsi %arg0, %c2_i32 : i32
    %c0_i32 = arith.constant 0 : i32
    %c0_i32_0 = arith.constant 0 : i32
    return %0, %c0_i32 : i32, i32
  }
  func.func @transform_7(%arg0: i32) -> (i32, i32) {
    %c0_i32 = arith.constant 0 : i32
    %0 = arith.minsi %arg0, %c0_i32 : i32
    %c0_i32_0 = arith.constant 0 : i32
    %c0_i32_1 = arith.constant 0 : i32
    return %0, %c0_i32_0 : i32, i32
  }
}

</mosaic_0001>

<llo_original>
// kernel: tpu_custom_call.1
$region0: #{tpu_custom_call.1}
  #allocation0 [shape = 'u32[]', space=smem, size = 0x4, offset = 0x4, fixed_abs, tag = 'smem constant byte address 0x4 - core index']
  #allocation1 [shape = 'u32[144,128]{1,0:T(1,128)}', space=vmem, size = 0x12000, scoped, tag = 'internal scratch']
  %s0 = inlined_call_operand.hbm [shape: f32[40,128], index: 0, kind: input, shape index: {}]
  %s1 = inlined_call_operand.vmem [shape: f32[1,128], index: 1, kind: input, shape index: {}]
  %s2 = inlined_call_operand.vmem [shape: f32[1,128], index: 2, kind: input, shape index: {}]
  %s3 = inlined_call_operand.vmem [shape: f32[16,1], index: 3, kind: input, shape index: {}]
  %s4 = inlined_call_operand.vmem [shape: f32[1,16], index: 4, kind: input, shape index: {}]
  %s5 = inlined_call_operand.vmem [shape: f32[16,16], index: 5, kind: input, shape index: {}]
  %s6 = inlined_call_operand.hbm [shape: f32[40,128], index: 6, kind: output, shape index: {0}]
  %s7 = inlined_call_operand.hbm [shape: f32[16,16], index: 7, kind: output, shape index: {1}]
  %8 = xla_tuple %s6, %s7
  %s9 = sld [smem:[#allocation0]]
  $region69: #{tpu_custom_call.1} parent=0
    _
  %s11 = ssub.s32 1, %s9
  %s12 = scalar_select 0, %s11, %s9
  $region1: #{tpu_custom_call.1} parent=0
    #allocation2 [shape = 'u8[16384]{0}', space=vmem, size = 0x4000, scoped, tag = 'input window, operand 0']
    #allocation3 [shape = 's32[2]{0}', space=sflag, size = 0x8, scoped, tag = 'scoped memory for tpu_custom_call.1']
    #allocation4 [shape = 's32[2]{0}', space=sflag, size = 0x8, scoped, tag = 'scoped memory for tpu_custom_call.1']
    #allocation5 [shape = 'u8[16384]{0}', space=vmem, size = 0x4000, scoped, tag = 'output window, operand 0']
    #allocation6 [shape = 'u8[16384]{0}', space=vmem, size = 0x4000, scoped, tag = 'output window, operand 1']
    #allocation7 [shape = 's32[2]{0}', space=sflag, size = 0x8, scoped, tag = 'scoped memory for tpu_custom_call.1']
    %13 = vsyncpa [#allocation3], 0
    %s14 = scalar_lea.sflag [#allocation3], 1
    %15 = vsyncpa %s14, 0
    %16 = vsyncpa [#allocation4], 0
    %s17 = scalar_lea.sflag [#allocation4], 1
    %18 = vsyncpa %s17, 0
    %19 = vsyncpa [#allocation7], 0
    %s20 = scalar_lea.sflag [#allocation7], 1
    %21 = vsyncpa %s20, 0
    loop: start=0, step=1, limit=5
    $region2: #{tpu_custom_call.1} parent=1 // loop_pre_header
      _
    $region3: #{tpu_custom_call.1} parent=1 // loop_header
      %s23 = sphi 0, %s27
      %p24 = scmp.ge.s32.totalorder %s23, 5
      %s37 = sphi 0, %s39
      %s40 = sphi 0, %s37
      %s41 = sphi 0, %s40
      %s57 = sphi 0, %s41
      %s61 = sphi 0, %s61
      %s63 = sphi 0, %s61
      %s64 = sphi 0, %s63
      %s78 = sphi 0, %s64
      %s82 = sphi 0, %s82
      %s84 = sphi 0, %s82
      %s85 = sphi 0, %s84
      %s99 = sphi 0, %s85
      %s109 = sphi 0, %s111
      %s112 = sphi 0, %s109
      %s113 = sphi 0, %s112
      %s129 = sphi 0, %s113
      %s133 = sphi 0, %s133
      %s135 = sphi 0, %s133
      %s136 = sphi 0, %s135
      %s150 = sphi 0, %s136
      %s160 = sphi 0, %s162
      %s163 = sphi 0, %s160
      %s164 = sphi 0, %s163
      %s180 = sphi 0, %s164
      %s190 = sphi 0, %s192
      %s193 = sphi 0, %s190
      %s194 = sphi 0, %s193
      %s210 = sphi 0, %s194
      %s220 = sphi 0, %s222
      %s223 = sphi 0, %s220
      %s224 = sphi 0, %s223
      %s240 = sphi 0, %s224
    $region4: #{tpu_custom_call.1} parent=1 // loop_header_branch
      %26 = sbr.rel (%p24) target = $region8
    $region5: #{tpu_custom_call.1} parent=1 // loop_body
      %s28 = ssub.s32 %s23, 1
      %s29 = ssub.s32 %s23, 2
      %s30 = sadd.s32 %s23, 1
      %p31 = scmp.lt.s32.totalorder %s23, 2
      %s32 = scalar_select %p31, %s23, 2
      %p33 = scmp.lt.s32.totalorder %s30, 2
      %s34 = scalar_select %p33, %s30, 2
      %s35 = ssub.s32 %s32, %s34
      %p36 = scmp.eq.s32.totalorder %s35, 0
      %s38 = sadd.s32 %s37, 1
      %s39 = scalar_select %p36, %s37, %s38
      %p42 = pneg %p36
      %p43 = scmp.eq.s32.totalorder %s23, 2
      %p44 = por %p42, %p43
      %p45 = scmp.ne.s32.totalorder %s37, %s40
      %p46 = scmp.eq.s32.totalorder %s23, 0
      %p47 = por %p45, %p46
      %p48 = scmp.ne.s32.totalorder %s37, %s40
      %p49 = scmp.eq.s32.totalorder %s28, 2
      %p50 = por %p48, %p49
      %p51 = scmp.ne.s32.totalorder %s40, %s41
      %p52 = scmp.eq.s32.totalorder %s28, 0
      %p53 = por %p51, %p52
      %p54 = scmp.ne.s32.totalorder %s40, %s41
      %p55 = scmp.eq.s32.totalorder %s29, 2
      %p56 = por %p54, %p55
      %p58 = scmp.ne.s32.totalorder %s41, %s57
      %p59 = scmp.eq.s32.totalorder %s29, 0
      %p60 = por %p58, %p59
      %s62 = sadd.s32 %s61, 1
      %p65 = scmp.eq.s32.totalorder %s23, 2
      %p66 = scmp.ne.s32.totalorder %s61, %s63
      %p67 = scmp.eq.s32.totalorder %s23, 0
      %p68 = por %p66, %p67
      %p69 = scmp.ne.s32.totalorder %s61, %s63
      %p70 = scmp.eq.s32.totalorder %s28, 2
      %p71 = por %p69, %p70
      %p72 = scmp.ne.s32.totalorder %s63, %s64
      %p73 = scmp.eq.s32.totalorder %s28, 0
      %p74 = por %p72, %p73
      %p75 = scmp.ne.s32.totalorder %s63, %s64
      %p76 = scmp.eq.s32.totalorder %s29, 2
      %p77 = por %p75, %p76
      %p79 = scmp.ne.s32.totalorder %s64, %s78
      %p80 = scmp.eq.s32.totalorder %s29, 0
      %p81 = por %p79, %p80
      %s83 = sadd.s32 %s82, 1
      %p86 = scmp.eq.s32.totalorder %s23, 2
      %p87 = scmp.ne.s32.totalorder %s82, %s84
      %p88 = scmp.eq.s32.totalorder %s23, 0
      %p89 = por %p87, %p88
      %p90 = scmp.ne.s32.totalorder %s82, %s84
      %p91 = scmp.eq.s32.totalorder %s28, 2
      %p92 = por %p90, %p91
      %p93 = scmp.ne.s32.totalorder %s84, %s85
      %p94 = scmp.eq.s32.totalorder %s28, 0
      %p95 = por %p93, %p94
      %p96 = scmp.ne.s32.totalorder %s84, %s85
      %p97 = scmp.eq.s32.totalorder %s29, 2
      %p98 = por %p96, %p97
      %p100 = scmp.ne.s32.totalorder %s85, %s99
      %p101 = scmp.eq.s32.totalorder %s29, 0
      %p102 = por %p100, %p101
      %p103 = scmp.lt.s32.totalorder %s23, 0
      %s104 = scalar_select %p103, %s23, 0
      %p105 = scmp.lt.s32.totalorder %s30, 0
      %s106 = scalar_select %p105, %s30, 0
      %s107 = ssub.s32 %s104, %s106
      %p108 = scmp.eq.s32.totalorder %s107, 0
      %s110 = sadd.s32 %s109, 1
      %s111 = scalar_select %p108, %s109, %s110
      %p114 = pneg %p108
      %p115 = scmp.eq.s32.totalorder %s23, 2
      %p116 = por %p114, %p115
      %p117 = scmp.ne.s32.totalorder %s109, %s112
      %p118 = scmp.eq.s32.totalorder %s23, 0
      %p119 = por %p117, %p118
      %p120 = scmp.ne.s32.totalorder %s109, %s112
      %p121 = scmp.eq.s32.totalorder %s28, 2
      %p122 = por %p120, %p121
      %p123 = scmp.ne.s32.totalorder %s112, %s113
      %p124 = scmp.eq.s32.totalorder %s28, 0
      %p125 = por %p123, %p124
      %p126 = scmp.ne.s32.totalorder %s112, %s113
      %p127 = scmp.eq.s32.totalorder %s29, 2
      %p128 = por %p126, %p127
      %p130 = scmp.ne.s32.totalorder %s113, %s129
      %p131 = scmp.eq.s32.totalorder %s29, 0
      %p132 = por %p130, %p131
      %s134 = sadd.s32 %s133, 1
      %p137 = scmp.eq.s32.totalorder %s23, 2
      %p138 = scmp.ne.s32.totalorder %s133, %s135
      %p139 = scmp.eq.s32.totalorder %s23, 0
      %p140 = por %p138, %p139
      %p141 = scmp.ne.s32.totalorder %s133, %s135
      %p142 = scmp.eq.s32.totalorder %s28, 2
      %p143 = por %p141, %p142
      %p144 = scmp.ne.s32.totalorder %s135, %s136
      %p145 = scmp.eq.s32.totalorder %s28, 0
      %p146 = por %p144, %p145
      %p147 = scmp.ne.s32.totalorder %s135, %s136
      %p148 = scmp.eq.s32.totalorder %s29, 2
      %p149 = por %p147, %p148
      %p151 = scmp.ne.s32.totalorder %s136, %s150
      %p152 = scmp.eq.s32.totalorder %s29, 0
      %p153 = por %p151, %p152
      %p154 = scmp.lt.s32.totalorder %s23, 0
      %s155 = scalar_select %p154, %s23, 0
      %p156 = scmp.lt.s32.totalorder %s30, 0
      %s157 = scalar_select %p156, %s30, 0
      %s158 = ssub.s32 %s155, %s157
      %p159 = scmp.eq.s32.totalorder %s158, 0
      %s161 = sadd.s32 %s160, 1
      %s162 = scalar_select %p159, %s160, %s161
      %p165 = pneg %p159
      %p166 = scmp.eq.s32.totalorder %s23, 2
      %p167 = por %p165, %p166
      %p168 = scmp.ne.s32.totalorder %s160, %s163
      %p169 = scmp.eq.s32.totalorder %s23, 0
      %p170 = por %p168, %p169
      %p171 = scmp.ne.s32.totalorder %s160, %s163
      %p172 = scmp.eq.s32.totalorder %s28, 2
      %p173 = por %p171, %p172
      %p174 = scmp.ne.s32.totalorder %s163, %s164
      %p175 = scmp.eq.s32.totalorder %s28, 0
      %p176 = por %p174, %p175
      %p177 = scmp.ne.s32.totalorder %s163, %s164
      %p178 = scmp.eq.s32.totalorder %s29, 2
      %p179 = por %p177, %p178
      %p181 = scmp.ne.s32.totalorder %s164, %s180
      %p182 = scmp.eq.s32.totalorder %s29, 0
      %p183 = por %p181, %p182
      %p184 = scmp.lt.s32.totalorder %s23, 2
      %s185 = scalar_select %p184, %s23, 2
      %p186 = scmp.lt.s32.totalorder %s30, 2
      %s187 = scalar_select %p186, %s30, 2
      %s188 = ssub.s32 %s185, %s187
      %p189 = scmp.eq.s32.totalorder %s188, 0
      %s191 = sadd.s32 %s190, 1
      %s192 = scalar_select %p189, %s190, %s191
      %p195 = pneg %p189
      %p196 = scmp.eq.s32.totalorder %s23, 2
      %p197 = por %p195, %p196
      %p198 = scmp.ne.s32.totalorder %s190, %s193
      %p199 = scmp.eq.s32.totalorder %s23, 0
      %p200 = por %p198, %p199
      %p201 = scmp.ne.s32.totalorder %s190, %s193
      %p202 = scmp.eq.s32.totalorder %s28, 2
      %p203 = por %p201, %p202
      %p204 = scmp.ne.s32.totalorder %s193, %s194
      %p205 = scmp.eq.s32.totalorder %s28, 0
      %p206 = por %p204, %p205
      %p207 = scmp.ne.s32.totalorder %s193, %s194
      %p208 = scmp.eq.s32.totalorder %s29, 2
      %p209 = por %p207, %p208
      %p211 = scmp.ne.s32.totalorder %s194, %s210
      %p212 = scmp.eq.s32.totalorder %s29, 0
      %p213 = por %p211, %p212
      %p214 = scmp.lt.s32.totalorder %s23, 0
      %s215 = scalar_select %p214, %s23, 0
      %p216 = scmp.lt.s32.totalorder %s30, 0
      %s217 = scalar_select %p216, %s30, 0
      %s218 = ssub.s32 %s215, %s217
      %p219 = scmp.eq.s32.totalorder %s218, 0
      %s221 = sadd.s32 %s220, 1
      %s222 = scalar_select %p219, %s220, %s221
      %p225 = pneg %p219
      %p226 = scmp.eq.s32.totalorder %s23, 2
      %p227 = por %p225, %p226
      %p228 = scmp.ne.s32.totalorder %s220, %s223
      %p229 = scmp.eq.s32.totalorder %s23, 0
      %p230 = por %p228, %p229
      %p231 = scmp.ne.s32.totalorder %s220, %s223
      %p232 = scmp.eq.s32.totalorder %s28, 2
      %p233 = por %p231, %p232
      %p234 = scmp.ne.s32.totalorder %s223, %s224
      %p235 = scmp.eq.s32.totalorder %s28, 0
      %p236 = por %p234, %p235
      %p237 = scmp.ne.s32.totalorder %s223, %s224
      %p238 = scmp.eq.s32.totalorder %s29, 2
      %p239 = por %p237, %p238
      %p241 = scmp.ne.s32.totalorder %s224, %s240
      %p242 = scmp.eq.s32.totalorder %s29, 0
      %p243 = por %p241, %p242
      %p244 = scmp.le.s32.totalorder 1, %s23
      %p245 = scmp.lt.s32.totalorder %s23, 4
      %p246 = pnand %p244, %p245
      %p247 = pneg %p246
      // Predicated region
      $region9: #{tpu_custom_call.1} parent=5 // pred_check
        _
      $region10: #{tpu_custom_call.1} parent=5 // pred_check_branch
        %249 = sbr.rel (%p246) target = $region12
      $region11: #{tpu_custom_call.1} parent=5 // pred_region
        %s250 = ssub.s32 %s23, 1
        // Predicated region
        $region13: #{tpu_custom_call.1} parent=11 // pred_check
          %p251 = pneg %p74
        $region14: #{tpu_custom_call.1} parent=11 // pred_check_branch
          %253 = sbr.rel (%p251) target = $region16
        $region15: #{tpu_custom_call.1} parent=11 // pred_region
          _
        $region16: #{tpu_custom_call.1} parent=11 // pred_fallthru
          _
        // Predicated region
        $region17: #{tpu_custom_call.1} parent=11 // pred_check
          %p254 = pneg %p95
        $region18: #{tpu_custom_call.1} parent=11 // pred_check_branch
          %256 = sbr.rel (%p254) target = $region20
        $region19: #{tpu_custom_call.1} parent=11 // pred_region
          _
        $region20: #{tpu_custom_call.1} parent=11 // pred_fallthru
          _
        // Predicated region
        $region21: #{tpu_custom_call.1} parent=11 // pred_check
          %p257 = pneg %p146
        $region22: #{tpu_custom_call.1} parent=11 // pred_check_branch
          %259 = sbr.rel (%p257) target = $region24
        $region23: #{tpu_custom_call.1} parent=11 // pred_region
          _
        $region24: #{tpu_custom_call.1} parent=11 // pred_fallthru
          _
      $region12: #{tpu_custom_call.1} parent=5 // pred_fallthru
        _
      %p260 = scmp.lt.s32.totalorder %s23, 3
      // Predicated region
      $region25: #{tpu_custom_call.1} parent=5 // pred_check
        %p261 = pneg %p260
      $region26: #{tpu_custom_call.1} parent=5 // pred_check_branch
        %263 = sbr.rel (%p261) target = $region28
      $region27: #{tpu_custom_call.1} parent=5 // pred_region
        // Predicated region
        $region29: #{tpu_custom_call.1} parent=27 // pred_check
          %p264 = pneg %p47
        $region30: #{tpu_custom_call.1} parent=27 // pred_check_branch
          %266 = sbr.rel (%p264) target = $region32
        $region31: #{tpu_custom_call.1} parent=27 // pred_region
          %s267 = sand.u32 %s37, 1
          %s268 = scalar_lea.sflag [#allocation3], %s267
          %s269 = sand.u32 %s37, 1
          %s270 = smul.addr %s269, 16
          %s271 = scalar_lea.vmem [#allocation2], %s270
          %p272 = scmp.lt.s32.totalorder %s23, 2
          %s273 = scalar_select %p272, %s23, 2
          %s274 = smul.u32 2, %s273
          %s275 = ssub.s32 5, %s274
          %p276 = scmp.lt.s32.totalorder %s275, 2
          %s277 = scalar_select %p276, %s275, 2
          %s278 = smul.u32 128, %s277
          %s280 = ssub.s32 256, %s278
          %281 = vsyncadd %s268, %s280
          %p282 = scmp.ne.s32.totalorder 0, %s278
          %s283 = smul.addr %s274, 128
          %s284 = scalar_lea.hbm %s0, %s283
          %s285 = smul.u32 8, %s277
          %s286 = sshll.u32 %s271, 4
          %s287 = int_to_ptr.vmem [resolvable:$true] %s286
          %s288 = sshll.u32 %s285, 4
          %292 = dma.hbm_to_vmem [thread:$0]  (%p282), %s284, %s288, %s287, %s268, 128, 128, 8
        $region32: #{tpu_custom_call.1} parent=27 // pred_fallthru
          _
        // Predicated region
        $region33: #{tpu_custom_call.1} parent=27 // pred_check
          %p293 = pneg %p119
        $region34: #{tpu_custom_call.1} parent=27 // pred_check_branch
          %295 = sbr.rel (%p293) target = $region36
        $region35: #{tpu_custom_call.1} parent=27 // pred_region
          %p296 = scmp.lt.s32.totalorder %s23, 0
          %s297 = scalar_select %p296, %s23, 0
          %s298 = smul.u32 2, %s297
          %p299 = scmp.lt.s32.totalorder %s298, 1
          %s300 = scalar_select %p299, %s298, 1
          %s301 = smul.addr %s300, 8
          %s302 = scalar_lea.vmem %s3, %s301
          %p303 = scmp.lt.s32.totalorder %s23, 0
          %s304 = scalar_select %p303, %s23, 0
          %s305 = smul.u32 2, %s304
        $region36: #{tpu_custom_call.1} parent=27 // pred_fallthru
          _
        // Predicated region
        $region37: #{tpu_custom_call.1} parent=27 // pred_check
          %p306 = pneg %p170
        $region38: #{tpu_custom_call.1} parent=27 // pred_check_branch
          %308 = sbr.rel (%p306) target = $region40
        $region39: #{tpu_custom_call.1} parent=27 // pred_region
          %p309 = scmp.lt.s32.totalorder %s23, 0
          %s310 = scalar_select %p309, %s23, 0
          %s311 = smul.u32 2, %s310
          %p312 = scmp.lt.s32.totalorder %s311, 1
          %s313 = scalar_select %p312, %s311, 1
          %s314 = smul.addr %s313, 8
          %s315 = scalar_lea.vmem %s5, %s314
          %p316 = scmp.lt.s32.totalorder %s23, 0
          %s317 = scalar_select %p316, %s23, 0
          %s318 = smul.u32 2, %s317
        $region40: #{tpu_custom_call.1} parent=27 // pred_fallthru
          _
      $region28: #{tpu_custom_call.1} parent=5 // pred_fallthru
        _
      %p319 = scmp.le.s32.totalorder 1, %s23
      %p320 = scmp.lt.s32.totalorder %s23, 4
      %p321 = pnand %p319, %p320
      %p322 = pneg %p321
      // Predicated region
      $region41: #{tpu_custom_call.1} parent=5 // pred_check
        _
      $region42: #{tpu_custom_call.1} parent=5 // pred_check_branch
        %324 = sbr.rel (%p321) target = $region44
      $region43: #{tpu_custom_call.1} parent=5 // pred_region
        %s325 = ssub.s32 %s23, 1
        %s326 = sand.u32 %s40, 1
        %s327 = scalar_lea.sflag [#allocation3], %s326
        %s328 = sand.u32 %s40, 1
        %s329 = smul.addr %s328, 16
        %s330 = scalar_lea.vmem [#allocation2], %s329
        // Predicated region
        $region45: #{tpu_custom_call.1} parent=43 // pred_check
          %p331 = pneg %p53
        $region46: #{tpu_custom_call.1} parent=43 // pred_check_branch
          %333 = sbr.rel (%p331) target = $region48
        $region47: #{tpu_custom_call.1} parent=43 // pred_region
          %334 = dma.done %s327, 256
        $region48: #{tpu_custom_call.1} parent=43 // pred_fallthru
          _
        %s335 = sand.u32 %s40, 1
        %s336 = scalar_lea.sflag [#allocation3], %s335
        %s337 = sand.u32 %s40, 1
        %s338 = smul.addr %s337, 16
        %s339 = scalar_lea.vmem [#allocation2], %s338
        %p340 = pneg %p53
        %p341 = pneg %p50
        %p342 = pneg %p74
        %p343 = pneg %p71
        %p344 = pneg %p95
        %p345 = pneg %p92
        %p346 = scmp.lt.s32.totalorder %s28, 0
        %s347 = scalar_select %p346, %s28, 0
        %s348 = smul.u32 2, %s347
        %p349 = scmp.lt.s32.totalorder %s348, 1
        %s350 = scalar_select %p349, %s348, 1
        %s351 = smul.addr %s350, 8
        %s352 = scalar_lea.vmem %s3, %s351
        %p353 = pneg %p125
        %p354 = pneg %p122
        %p355 = pneg %p146
        %p356 = pneg %p143
        %p357 = scmp.lt.s32.totalorder %s28, 0
        %s358 = scalar_select %p357, %s28, 0
        %s359 = smul.u32 2, %s358
        %p360 = scmp.lt.s32.totalorder %s359, 1
        %s361 = scalar_select %p360, %s359, 1
        %s362 = smul.addr %s361, 8
        %s363 = scalar_lea.vmem %s5, %s362
        %p364 = pneg %p176
        %p365 = pneg %p173
        %p366 = pneg %p206
        %p367 = pneg %p203
        %s368 = sand.u32 %s193, 1
        %s369 = scalar_lea.sflag [#allocation4], %s368
        %s370 = sand.u32 %s193, 1
        %s371 = smul.addr %s370, 16
        %s372 = scalar_lea.vmem [#allocation5], %s371
        %p373 = pneg %p236
        %p374 = pneg %p233
        %s375 = sand.u32 %s223, 1
        %s376 = scalar_lea.sflag [#allocation7], %s375
        %s377 = sand.u32 %s223, 1
        %s378 = smul.addr %s377, 16
        %s379 = scalar_lea.vmem [#allocation6], %s378
        %p380 = scmp.lt.s32.totalorder %s28, 2
        %s381 = scalar_select %p380, %s28, 2
        %s382 = smul.u32 2, %s381
        %s383 = ssub.s32 5, %s382
        %p384 = scmp.lt.s32.totalorder %s383, 2
        %s385 = scalar_select %p384, %s383, 2
        %s386 = smul.u32 128, %s385
        %p387 = scmp.lt.s32.totalorder %s28, 0
        %s388 = scalar_select %p387, %s28, 0
        %s389 = smul.u32 2, %s388
        %p390 = scmp.lt.s32.totalorder %s389, 1
        %s391 = scalar_select %p390, %s389, 1
        %s392 = smul.addr %s391, 8
        %s393 = scalar_lea.vmem %s3, %s392
        %p394 = scmp.lt.s32.totalorder %s28, 0
        %s395 = scalar_select %p394, %s28, 0
        %s396 = smul.u32 2, %s395
        %p397 = scmp.lt.s32.totalorder %s28, 0
        %s398 = scalar_select %p397, %s28, 0
        %s399 = smul.u32 2, %s398
        %p400 = scmp.lt.s32.totalorder %s399, 1
        %s401 = scalar_select %p400, %s399, 1
        %s402 = smul.addr %s401, 8
        %s403 = scalar_lea.vmem %s5, %s402
        %p404 = scmp.lt.s32.totalorder %s28, 0
        %s405 = scalar_select %p404, %s28, 0
        %s406 = smul.u32 2, %s405
        %p407 = scmp.lt.s32.totalorder %s28, 2
        %s408 = scalar_select %p407, %s28, 2
        %s409 = smul.u32 2, %s408
        %s410 = ssub.s32 5, %s409
        %p411 = scmp.lt.s32.totalorder %s410, 2
        %s412 = scalar_select %p411, %s410, 2
        %s413 = smul.u32 128, %s412
        %p414 = scmp.lt.s32.totalorder %s28, 0
        %s415 = scalar_select %p414, %s28, 0
        %s416 = smul.u32 2, %s415
        %v417 = vld [vmem:[%s2] sm:$0x1]
        %v418 = vrcp.pop %v417
        %v419 = vmul.f32 1.0, %v418
        %v420 = vld [vmem:[%s330] sm:$0xff]
        %v421 = vld [vmem:[%s330 + $0x8] sm:$0xff]
        %v422 = vld [vmem:[%s1] sm:$0x1]
        %v424 = vlaneseq
        %v425 = vshrl.u32 %v424, 7
        %v426 = vsub.s32 0, %v425
        %v427 = vrot.slane %v422, %v426
        %v429 = vsub.f32 %v420, %v427
        %v430 = vsub.f32 %v421, %v427
        %v432 = vlaneseq
        %v433 = vshrl.u32 %v432, 7
        %v434 = vsub.s32 0, %v433
        %v435 = vrot.slane %v419, %v434
        %v437 = vmul.f32 %v429, %v435
        %v438 = vmul.f32 %v430, %v435
        %439 = vst [vmem:[%s372] sm:$0xff] %v437
        %440 = vst [vmem:[%s372 + $0x8] sm:$0xff] %v438
        %v441 = vld [vmem:[%s393] sm:$0xff]
        %v442 = vld [vmem:[%s393 + $0x8] sm:$0xff]
        %v443 = vrcp.pop %v441
        %v444 = vmul.f32 1.0, %v443
        %v445 = vrcp.pop %v442
        %v446 = vmul.f32 1.0, %v445
        %v447 = vld [vmem:[%s4] sm:$0x1]
        %v448 = vrcp.pop %v447
        %v449 = vmul.f32 1.0, %v448
        %v450 = vld [vmem:[%s403] sm:$0xff]
        %v451 = vld [vmem:[%s403 + $0x8] sm:$0xff]
        %453 = vset.pattern.permute.xlu0 0
        %454 = vperm.xlu0 %453, %v444
        %v455 = vpop.permute.xlu0 %454
        %458 = vset.pattern.permute.xlu0 0
        %459 = vperm.xlu0 %458, %v446
        %v460 = vpop.permute.xlu0 %459
        %v462 = vmul.f32 %v450, %v455
        %v463 = vmul.f32 %v451, %v460
        %v465 = vlaneseq
        %v466 = vshrl.u32 %v465, 7
        %v467 = vsub.s32 0, %v466
        %v468 = vrot.slane %v449, %v467
        %v470 = vmul.f32 %v462, %v468
        %v471 = vmul.f32 %v463, %v468
        %vm472 = vcmask 130048
        %473 = vst.msk [vmem:[%s379] sm:$0xff] %vm472, %v470
        %474 = vst.msk [vmem:[%s379 + $0x8] sm:$0xff] %vm472, %v471
        %s475 = sand.u32 %s193, 1
        %s476 = scalar_lea.sflag [#allocation4], %s475
        %s477 = sand.u32 %s193, 1
        %s478 = smul.addr %s477, 16
        %s479 = scalar_lea.vmem [#allocation5], %s478
        %s480 = sand.u32 %s223, 1
        %s481 = scalar_lea.sflag [#allocation7], %s480
        %s482 = sand.u32 %s223, 1
        %s483 = smul.addr %s482, 16
        %s484 = scalar_lea.vmem [#allocation6], %s483
        // Predicated region
        $region49: #{tpu_custom_call.1} parent=43 // pred_check
          %p485 = pneg %p203
        $region50: #{tpu_custom_call.1} parent=43 // pred_check_branch
          %487 = sbr.rel (%p485) target = $region52
        $region51: #{tpu_custom_call.1} parent=43 // pred_region
          %p488 = scmp.lt.s32.totalorder %s28, 2
          %s489 = scalar_select %p488, %s28, 2
          %s490 = smul.u32 2, %s489
          %s491 = ssub.s32 5, %s490
          %p492 = scmp.lt.s32.totalorder %s491, 2
          %s493 = scalar_select %p492, %s491, 2
          %s494 = smul.u32 128, %s493
          %s496 = ssub.s32 256, %s494
          %497 = vsyncadd %s476, %s496
          %p498 = scmp.ne.s32.totalorder 0, %s494
          %s499 = smul.addr %s490, 128
          %s500 = scalar_lea.hbm %s6, %s499
          %s501 = smul.u32 8, %s493
          %s502 = sshll.u32 %s479, 4
          %s503 = int_to_ptr.vmem [resolvable:$true] %s502
          %s504 = sshll.u32 %s501, 4
          %508 = dma.vmem_to_hbm [thread:$0]  (%p498), %s503, %s504, %s500, %s476, 128, 128, 8
        $region52: #{tpu_custom_call.1} parent=43 // pred_fallthru
          _
        // Predicated region
        $region53: #{tpu_custom_call.1} parent=43 // pred_check
          %p509 = pneg %p233
        $region54: #{tpu_custom_call.1} parent=43 // pred_check_branch
          %511 = sbr.rel (%p509) target = $region56
        $region55: #{tpu_custom_call.1} parent=43 // pred_region
          %p512 = scmp.lt.s32.totalorder %s28, 0
          %s513 = scalar_select %p512, %s28, 0
          %s514 = smul.u32 2, %s513
          %s516 = ssub.s32 256, 256
          %517 = vsyncadd %s481, %s516
          %s518 = smul.addr %s514, 128
          %s519 = scalar_lea.hbm %s7, %s518
          %s520 = sshll.u32 %s484, 4
          %s521 = int_to_ptr.vmem [resolvable:$true] %s520
          %526 = dma.vmem_to_hbm [thread:$0]  %s521, 256, %s519, %s481, 128, 128, 8
        $region56: #{tpu_custom_call.1} parent=43 // pred_fallthru
          _
      $region44: #{tpu_custom_call.1} parent=5 // pred_fallthru
        _
      %p527 = scmp.le.s32.totalorder 2, %s23
      // Predicated region
      $region57: #{tpu_custom_call.1} parent=5 // pred_check
        %p528 = pneg %p527
      $region58: #{tpu_custom_call.1} parent=5 // pred_check_branch
        %530 = sbr.rel (%p528) target = $region60
      $region59: #{tpu_custom_call.1} parent=5 // pred_region
        %s531 = ssub.s32 %s23, 2
        // Predicated region
        $region61: #{tpu_custom_call.1} parent=59 // pred_check
          %p532 = pneg %p209
        $region62: #{tpu_custom_call.1} parent=59 // pred_check_branch
          %534 = sbr.rel (%p532) target = $region64
        $region63: #{tpu_custom_call.1} parent=59 // pred_region
          %s535 = sand.u32 %s194, 1
          %s536 = scalar_lea.sflag [#allocation4], %s535
          %s537 = sand.u32 %s194, 1
          %s538 = smul.addr %s537, 16
          %s539 = scalar_lea.vmem [#allocation5], %s538
          %540 = dma.done %s536, 256
        $region64: #{tpu_custom_call.1} parent=59 // pred_fallthru
          _
        // Predicated region
        $region65: #{tpu_custom_call.1} parent=59 // pred_check
          %p541 = pneg %p239
        $region66: #{tpu_custom_call.1} parent=59 // pred_check_branch
          %543 = sbr.rel (%p541) target = $region68
        $region67: #{tpu_custom_call.1} parent=59 // pred_region
          %s544 = sand.u32 %s224, 1
          %s545 = scalar_lea.sflag [#allocation7], %s544
          %s546 = sand.u32 %s224, 1
          %s547 = smul.addr %s546, 16
          %s548 = scalar_lea.vmem [#allocation6], %s547
          %549 = dma.done %s545, 256
        $region68: #{tpu_custom_call.1} parent=59 // pred_fallthru
          _
      $region60: #{tpu_custom_call.1} parent=5 // pred_fallthru
        _
    $region6: #{tpu_custom_call.1} parent=1 // loop_footer
      %s27 = sadd.s32 1, %s23
    $region7: #{tpu_custom_call.1} parent=1 // loop_footer_branch
      %22 = sbr.rel target = $region3
    $region8: #{tpu_custom_call.1} parent=1 // loop_exit
      _
    %550 = vsyncpa [#allocation3], 1
    %s551 = scalar_lea.sflag [#allocation3], 1
    %552 = vsyncpa %s551, 1
    %553 = vsyncpa [#allocation4], 1
    %s554 = scalar_lea.sflag [#allocation4], 1
    %555 = vsyncpa %s554, 1
    %556 = vsyncpa [#allocation7], 1
    %s557 = scalar_lea.sflag [#allocation7], 1
    %558 = vsyncpa %s557, 1

</llo_original>
